<compile_context>
chip_gen: v5e
topology: v5e:2x2
jax: 0.10.0
libtpu: 0.0.40
codegen_flags: <defaults>
</compile_context>

<pallas_src>
import jax
import jax.numpy as jnp
from jax.experimental import pallas as pl
from jax.experimental.pallas import tpu as pltpu


# ------------------------------ Pallas kernel ------------------------------ #

def fused_kernel(p_ref, l_ref, c_ref, b2_ref, o_ref):
    # p_ref : (Bn, 24, 16)  VMEM  im2col patches, row k2 = 2*(c*4+kh*2+kw) + h,
    #                             col = column of the final 16x16 image row with parity h
    # l_ref : (16, 24)      VMEM  L[r, 2k+h] = 3*w2 * W1[r//2, k] * (h == r % 2)
    # c_ref : (16, 1)       VMEM  c16[r]     = 3*w2 * b1[r//2] + b2
    # b2_ref: (1, 1)        SMEM  conv2 bias (value of the zero-pad border)
    # o_ref : (Bn, 18, 18)  VMEM  final conv2 output tile for these Bn batch elements
    bn = p_ref.shape[0]
    b2 = b2_ref[0, 0]

    # One batched MXU matmul per grid step; result is already in (batch, row, col) order.
    lb = jnp.broadcast_to(l_ref[...], (bn, 16, 24))
    y16 = jnp.einsum("brk,bkc->brc", lb, p_ref[...],
                     preferred_element_type=jnp.float32) + c_ref[...]   # (Bn, 16, 16)

    # Border of the zero-padded 1x1 conv2 is exactly b2; interior is y16.  Two stores.
    o_ref[...] = jnp.zeros((bn, 18, 18), jnp.float32) + b2
    o_ref[:, pl.ds(1, 16), pl.ds(1, 16)] = y16


# -------------------------------- wrapper ----------------------------------- #

def model_forward(x, w1, b1, w2, b2, *, batch_block=None):
    """x: (N, 3, H, W) NCHW float32 with H, W even and 8*(H//2+1)*(W//2+1) == 256.
    Returns (N, 1, 18, 18)."""
    N, C, H, W = x.shape
    if C != 3 or H % 2 or W % 2 or 8 * (H // 2 + 1) * (W // 2 + 1) != 256:
        raise ValueError(
            "forward requires flatten(conv1(x)) == 256 per batch element "
            "(conv2 has in_channels=1); use e.g. x of shape (N, 3, 6, 14).")
    Ho, Wo = H // 2 + 1, W // 2 + 1                                  # conv1 output spatial

    x = x.astype(jnp.float32)
    w2s = w2.reshape(()).astype(jnp.float32)
    b2s = b2.reshape(()).astype(jnp.float32)

    # Fold x3 and conv2's scalar affine into conv1:  W_eff = 3*w2*W1,  c_eff = 3*w2*b1 + b2.
    we = (3.0 * w2s) * w1.reshape(8, 12).astype(jnp.float32)          # (8, 12), k = c*4+kh*2+kw
    # Expand W_eff so the matmul emits 16x16 image rows directly (no in-kernel relayout):
    #   L[r, 2k+h] = W_eff[r//2, k] * (h == r % 2)
    eye2 = jnp.eye(2, dtype=jnp.float32)
    lmat = (we[:, None, :, None] * eye2[None, :, None, :]).reshape(16, 24)
    c16 = jnp.repeat((3.0 * w2s) * b1.astype(jnp.float32) + b2s, 2).reshape(16, 1)
    b2v = b2s.reshape(1, 1)

    # im2col patches, pre-laid out lane-dense as (N, 24, 16) (one tiny XLA fusion).
    xp = jnp.pad(x, ((0, 0), (0, 0), (1, 1), (1, 1)))                 # (N, 3, H+2, W+2)
    pT = (xp.reshape(N, 3, Ho, 2, Wo, 2)
            .transpose(0, 1, 3, 5, 2, 4)                              # (N, c, kh, kw, ho, wo)
            .reshape(N, 24, 16))                                      # row = 2k+h, col = image col

    # Batch many elements per grid step; keep >= 2 parallel steps when N allows (v7x: 2 TCs).
    if batch_block is None:
        batch_block = min(1024, -(-N // 2)) if N > 1 else 1
    batch_block = max(1, min(batch_block, N))
    while N % batch_block:
        batch_block -= 1
    grid = (N // batch_block,)

    out = pl.pallas_call(
        fused_kernel,
        out_shape=jax.ShapeDtypeStruct((N, 18, 18), jnp.float32),
        grid=grid,
        in_specs=[
            pl.BlockSpec((batch_block, 24, 16), lambda i: (i, 0, 0)),   # per-step patches
            pl.BlockSpec((16, 24), lambda i: (0, 0)),                   # folded weight L
            pl.BlockSpec((16, 1), lambda i: (0, 0)),                    # folded bias column
            pl.BlockSpec(memory_space=pltpu.MemorySpace.SMEM),          # b2 scalar (border)
        ],
        out_specs=pl.BlockSpec((batch_block, 18, 18), lambda i: (i, 0, 0)),
        compiler_params=pltpu.CompilerParams(
            dimension_semantics=("parallel",)),
    )(pT, lmat, c16, b2v)

    return out.reshape(N, 1, 18, 18)


# --------------------------- pure-JAX reference ------------------------------ #

def reference(x, w1, b1, w2, b2):
    dn = ('NCHW', 'OIHW', 'NCHW')
    v1 = jax.lax.conv_general_dilated(x, w1, window_strides=(2, 2),
                                      padding=((1, 1), (1, 1)),
                                      dimension_numbers=dn)
    v1 = v1 + b1[None, :, None, None]
    v2 = v1.reshape(v1.shape[0], -1)
    v7 = v2 + v2 + v2
    v7r = v7.reshape(v2.shape[0], -1, 16, 16)
    v8 = jax.lax.conv_general_dilated(v7r, w2, window_strides=(1, 1),
                                      padding=((1, 1), (1, 1)),
                                      dimension_numbers=dn)
    return v8 + b2[None, :, None, None]


# ----------------------------------- main ------------------------------------ #

if __name__ == "__main__":
    key = jax.random.PRNGKey(0)
    k_x, k_w1, k_b1, k_w2, k_b2 = jax.random.split(key, 5)

    # Batch of 8 so the batched grid (2 parallel steps x 4 elements) is exercised.
    N = 8
    x = jax.random.normal(k_x, (N, 3, 6, 14), dtype=jnp.float32)

    # Deterministic parameter init (shapes from the module's __init__).
    w1 = jax.random.normal(k_w1, (8, 3, 2, 2), dtype=jnp.float32) * 0.2
    b1 = jax.random.normal(k_b1, (8,), dtype=jnp.float32) * 0.1
    w2 = jax.random.normal(k_w2, (1, 1, 1, 1), dtype=jnp.float32) * 0.5
    b2 = jax.random.normal(k_b2, (1,), dtype=jnp.float32) * 0.1

    fwd = jax.jit(model_forward)
    ref_fn = jax.jit(reference)

    out = jax.block_until_ready(fwd(x, w1, b1, w2, b2))
    ref = jax.block_until_ready(ref_fn(x, w1, b1, w2, b2))

    assert out.shape == (N, 1, 18, 18), out.shape
    assert jnp.allclose(out, ref, rtol=1e-4, atol=1e-4), \
        float(jnp.max(jnp.abs(out - ref)))

    print("KERNEL_OK")
</pallas_src>

<mosaic_0001>
module attributes {stable_mosaic.version = 11 : i64} {
  func.func @fused_kernel(%arg0: i32, %arg1: memref<4x24x16xf32, #tpu.memory_space<vmem>>, %arg2: memref<16x24xf32, #tpu.memory_space<vmem>>, %arg3: memref<16x1xf32, #tpu.memory_space<vmem>>, %arg4: memref<1x1xf32, #tpu.memory_space<smem>>, %arg5: memref<4x18x18xf32, #tpu.memory_space<vmem>>) attributes {dimension_semantics = [#tpu.dimension_semantics<parallel>], iteration_bounds = array<i64: 2>, scalar_prefetch = 0 : i64, scratch_operands = 0 : i64, tpu.core_type = #tpu.core_type<tc>, window_params = [{transform_indices = @transform_0, window_bounds = array<i64: 4, 24, 16>}, {pipeline_mode = #tpu.pipeline_mode<synchronous>, transform_indices = @transform_1, window_bounds = array<i64: 16, 24>}, {pipeline_mode = #tpu.pipeline_mode<synchronous>, transform_indices = @transform_2, window_bounds = array<i64: 16, 1>}, {transform_indices = @transform_3, window_bounds = array<i64: 1, 1>}, {transform_indices = @transform_4, window_bounds = array<i64: 4, 18, 18>}]} {
    %c0 = arith.constant 0 : index
    %c0_0 = arith.constant 0 : index
    %0 = memref.load %arg4[%c0, %c0_0] : memref<1x1xf32, #tpu.memory_space<smem>>
    %c0_1 = arith.constant 0 : index
    %c0_2 = arith.constant 0 : index
    %1 = vector.load %arg2[%c0_1, %c0_2] : memref<16x24xf32, #tpu.memory_space<vmem>>, vector<16x24xf32>
    %2 = vector.shape_cast %1 : vector<16x24xf32> to vector<1x16x24xf32>
    %3 = vector.broadcast %2 : vector<1x16x24xf32> to vector<4x16x24xf32>
    %c0_3 = arith.constant 0 : index
    %c0_4 = arith.constant 0 : index
    %c0_5 = arith.constant 0 : index
    %4 = vector.load %arg1[%c0_3, %c0_4, %c0_5] : memref<4x24x16xf32, #tpu.memory_space<vmem>>, vector<4x24x16xf32>
    "tpu.trace_start"() <{level = 10 : i32, message = "brk,bkc->brc"}> : () -> ()
    %cst = arith.constant dense<0.000000e+00> : vector<4x16x16xf32>
    %5 = tpu.matmul %3, %4, %cst {dimension_numbers = #tpu.dot_dimension_numbers<[2], [1], [1], [2], [0, 0, 0, 1, 1, 2], [0], [0]>} : vector<4x16x24xf32>, vector<4x24x16xf32>, vector<4x16x16xf32> -> vector<4x16x16xf32>
    "tpu.trace_stop"() : () -> ()
    %c0_6 = arith.constant 0 : index
    %c0_7 = arith.constant 0 : index
    %6 = vector.load %arg3[%c0_6, %c0_7] : memref<16x1xf32, #tpu.memory_space<vmem>>, vector<16x1xf32>
    %7 = vector.shape_cast %6 : vector<16x1xf32> to vector<1x16x1xf32>
    %8 = vector.broadcast %7 : vector<1x16x1xf32> to vector<4x16x16xf32>
    %9 = arith.addf %5, %8 : vector<4x16x16xf32>
    %cst_8 = arith.constant 0.000000e+00 : f32
    %10 = vector.broadcast %cst_8 : f32 to vector<4x18x18xf32>
    %11 = vector.broadcast %0 : f32 to vector<4x18x18xf32>
    %12 = arith.addf %10, %11 : vector<4x18x18xf32>
    %c0_9 = arith.constant 0 : index
    %c0_10 = arith.constant 0 : index
    %c0_11 = arith.constant 0 : index
    %13 = vector.load %arg5[%c0_9, %c0_10, %c0_11] : memref<4x18x18xf32, #tpu.memory_space<vmem>>, vector<4x18x18xf32>
    tpu.vector_store %arg5[%c0_9, %c0_10, %c0_11], %12 {strides = array<i32>} : memref<4x18x18xf32, #tpu.memory_space<vmem>>, vector<4x18x18xf32>,
    %c0_12 = arith.constant 0 : index
    %c1 = arith.constant 1 : index
    %c1_13 = arith.constant 1 : index
    %14 = vector.load %arg5[%c0_12, %c1, %c1_13] : memref<4x18x18xf32, #tpu.memory_space<vmem>>, vector<4x16x16xf32>
    tpu.vector_store %arg5[%c0_12, %c1, %c1_13], %9 {strides = array<i32>} : memref<4x18x18xf32, #tpu.memory_space<vmem>>, vector<4x16x16xf32>,
    return
  }
  func.func @transform_0(%arg0: i32) -> (i32, i32, i32) {
    %c0_i32 = arith.constant 0 : i32
    %c0_i32_0 = arith.constant 0 : i32
    %c0_i32_1 = arith.constant 0 : i32
    return %arg0, %c0_i32, %c0_i32_0 : i32, i32, i32
  }
  func.func @transform_1(%arg0: i32) -> (i32, i32) {
    %c0_i32 = arith.constant 0 : i32
    %c0_i32_0 = arith.constant 0 : i32
    %c0_i32_1 = arith.constant 0 : i32
    return %c0_i32, %c0_i32_0 : i32, i32
  }
  func.func @transform_2(%arg0: i32) -> (i32, i32) {
    %c0_i32 = arith.constant 0 : i32
    %c0_i32_0 = arith.constant 0 : i32
    %c0_i32_1 = arith.constant 0 : i32
    return %c0_i32, %c0_i32_0 : i32, i32
  }
  func.func @transform_3(%arg0: i32) -> (i32, i32) {
    %c0_i32 = arith.constant 0 : i32
    %c0_i32_0 = arith.constant 0 : i32
    %c0_i32_1 = arith.constant 0 : i32
    return %c0_i32, %c0_i32_0 : i32, i32
  }
  func.func @transform_4(%arg0: i32) -> (i32, i32, i32) {
    %c0_i32 = arith.constant 0 : i32
    %c0_i32_0 = arith.constant 0 : i32
    %c0_i32_1 = arith.constant 0 : i32
    return %arg0, %c0_i32, %c0_i32_0 : i32, i32, i32
  }
}

</mosaic_0001>

<llo_original>
// kernel: model_forward.1
$region0: #{model_forward.1}
  #allocation0 [shape = 'u32[]', space=smem, size = 0x4, offset = 0x4, fixed_abs, tag = 'smem constant byte address 0x4 - core index']
  #allocation1 [shape = 'u32[72,128]{1,0:T(1,128)}', space=vmem, size = 0x9000, scoped, tag = 'internal scratch']
  #allocation2 [shape = 'f32[1,1]{1,0:T(1,128)S(6)}', space=smem, size = 0x200, scoped, tag = 'scoped memory for model_forward.1']
  %s0 = inlined_call_operand.vmem [shape: f32[8,24,16], index: 0, kind: input, shape index: {}]
  %s1 = inlined_call_operand.vmem [shape: f32[16,24], index: 1, kind: input, shape index: {}]
  %s2 = inlined_call_operand.vmem [shape: f32[16,1], index: 2, kind: input, shape index: {}]
  %s3 = inlined_call_operand.<no memory space> [shape: f32[1,1], index: 3, kind: input, shape index: {}]
  %s4 = inlined_call_operand.vmem [shape: f32[8,18,18], index: 4, kind: output, shape index: {}]
  %s5 = sld [smem:[#allocation0]]
  $region49: #{model_forward.1} parent=0
    _
  %s7 = ssub.s32 1, %s5
  %s8 = scalar_select 0, %s7, %s5
  %9 = sst [smem:[#allocation2]] %s3
  loop: start=0, step=1, limit=4
  $region2: #{model_forward.1} parent=0 // loop_pre_header
    _
  $region3: #{model_forward.1} parent=0 // loop_header
    %s11 = sphi 0, %s15
    %p12 = scmp.ge.s32.totalorder %s11, 4
    %s21 = sphi 0, %s23
    %s24 = sphi 0, %s21
    %s25 = sphi 0, %s24
    %s41 = sphi 0, %s25
    %s45 = sphi 0, %s45
    %s47 = sphi 0, %s45
    %s48 = sphi 0, %s47
    %s62 = sphi 0, %s48
    %s66 = sphi 0, %s66
    %s68 = sphi 0, %s66
    %s69 = sphi 0, %s68
    %s83 = sphi 0, %s69
    %s87 = sphi 0, %s87
    %s89 = sphi 0, %s87
    %s90 = sphi 0, %s89
    %s104 = sphi 0, %s90
    %s110 = sphi 0, %s112
    %s113 = sphi 0, %s110
    %s114 = sphi 0, %s113
    %s130 = sphi 0, %s114
  $region4: #{model_forward.1} parent=0 // loop_header_branch
    %14 = sbr.rel (%p12) target = $region8
  $region5: #{model_forward.1} parent=0 // loop_body
    %s16 = ssub.s32 %s11, 1
    %s17 = ssub.s32 %s11, 2
    %s18 = sadd.s32 %s11, 1
    %s19 = ssub.s32 %s11, %s18
    %p20 = scmp.eq.s32.totalorder %s19, 0
    %s22 = sadd.s32 %s21, 1
    %s23 = scalar_select %p20, %s21, %s22
    %p26 = pneg %p20
    %p27 = scmp.eq.s32.totalorder %s11, 1
    %p28 = por %p26, %p27
    %p29 = scmp.ne.s32.totalorder %s21, %s24
    %p30 = scmp.eq.s32.totalorder %s11, 0
    %p31 = por %p29, %p30
    %p32 = scmp.ne.s32.totalorder %s21, %s24
    %p33 = scmp.eq.s32.totalorder %s16, 1
    %p34 = por %p32, %p33
    %p35 = scmp.ne.s32.totalorder %s24, %s25
    %p36 = scmp.eq.s32.totalorder %s16, 0
    %p37 = por %p35, %p36
    %p38 = scmp.ne.s32.totalorder %s24, %s25
    %p39 = scmp.eq.s32.totalorder %s17, 1
    %p40 = por %p38, %p39
    %p42 = scmp.ne.s32.totalorder %s25, %s41
    %p43 = scmp.eq.s32.totalorder %s17, 0
    %p44 = por %p42, %p43
    %s46 = sadd.s32 %s45, 1
    %p49 = scmp.eq.s32.totalorder %s11, 1
    %p50 = scmp.ne.s32.totalorder %s45, %s47
    %p51 = scmp.eq.s32.totalorder %s11, 0
    %p52 = por %p50, %p51
    %p53 = scmp.ne.s32.totalorder %s45, %s47
    %p54 = scmp.eq.s32.totalorder %s16, 1
    %p55 = por %p53, %p54
    %p56 = scmp.ne.s32.totalorder %s47, %s48
    %p57 = scmp.eq.s32.totalorder %s16, 0
    %p58 = por %p56, %p57
    %p59 = scmp.ne.s32.totalorder %s47, %s48
    %p60 = scmp.eq.s32.totalorder %s17, 1
    %p61 = por %p59, %p60
    %p63 = scmp.ne.s32.totalorder %s48, %s62
    %p64 = scmp.eq.s32.totalorder %s17, 0
    %p65 = por %p63, %p64
    %s67 = sadd.s32 %s66, 1
    %p70 = scmp.eq.s32.totalorder %s11, 1
    %p71 = scmp.ne.s32.totalorder %s66, %s68
    %p72 = scmp.eq.s32.totalorder %s11, 0
    %p73 = por %p71, %p72
    %p74 = scmp.ne.s32.totalorder %s66, %s68
    %p75 = scmp.eq.s32.totalorder %s16, 1
    %p76 = por %p74, %p75
    %p77 = scmp.ne.s32.totalorder %s68, %s69
    %p78 = scmp.eq.s32.totalorder %s16, 0
    %p79 = por %p77, %p78
    %p80 = scmp.ne.s32.totalorder %s68, %s69
    %p81 = scmp.eq.s32.totalorder %s17, 1
    %p82 = por %p80, %p81
    %p84 = scmp.ne.s32.totalorder %s69, %s83
    %p85 = scmp.eq.s32.totalorder %s17, 0
    %p86 = por %p84, %p85
    %s88 = sadd.s32 %s87, 1
    %p91 = scmp.eq.s32.totalorder %s11, 1
    %p92 = scmp.ne.s32.totalorder %s87, %s89
    %p93 = scmp.eq.s32.totalorder %s11, 0
    %p94 = por %p92, %p93
    %p95 = scmp.ne.s32.totalorder %s87, %s89
    %p96 = scmp.eq.s32.totalorder %s16, 1
    %p97 = por %p95, %p96
    %p98 = scmp.ne.s32.totalorder %s89, %s90
    %p99 = scmp.eq.s32.totalorder %s16, 0
    %p100 = por %p98, %p99
    %p101 = scmp.ne.s32.totalorder %s89, %s90
    %p102 = scmp.eq.s32.totalorder %s17, 1
    %p103 = por %p101, %p102
    %p105 = scmp.ne.s32.totalorder %s90, %s104
    %p106 = scmp.eq.s32.totalorder %s17, 0
    %p107 = por %p105, %p106
    %s108 = ssub.s32 %s11, %s18
    %p109 = scmp.eq.s32.totalorder %s108, 0
    %s111 = sadd.s32 %s110, 1
    %s112 = scalar_select %p109, %s110, %s111
    %p115 = pneg %p109
    %p116 = scmp.eq.s32.totalorder %s11, 1
    %p117 = por %p115, %p116
    %p118 = scmp.ne.s32.totalorder %s110, %s113
    %p119 = scmp.eq.s32.totalorder %s11, 0
    %p120 = por %p118, %p119
    %p121 = scmp.ne.s32.totalorder %s110, %s113
    %p122 = scmp.eq.s32.totalorder %s16, 1
    %p123 = por %p121, %p122
    %p124 = scmp.ne.s32.totalorder %s113, %s114
    %p125 = scmp.eq.s32.totalorder %s16, 0
    %p126 = por %p124, %p125
    %p127 = scmp.ne.s32.totalorder %s113, %s114
    %p128 = scmp.eq.s32.totalorder %s17, 1
    %p129 = por %p127, %p128
    %p131 = scmp.ne.s32.totalorder %s114, %s130
    %p132 = scmp.eq.s32.totalorder %s17, 0
    %p133 = por %p131, %p132
    %p134 = scmp.le.s32.totalorder 1, %s11
    %p135 = scmp.lt.s32.totalorder %s11, 3
    %p136 = pnand %p134, %p135
    %p137 = pneg %p136
    // Predicated region
    $region9: #{model_forward.1} parent=5 // pred_check
      _
    $region10: #{model_forward.1} parent=5 // pred_check_branch
      %139 = sbr.rel (%p136) target = $region12
    $region11: #{model_forward.1} parent=5 // pred_region
      %s140 = ssub.s32 %s11, 1
      // Predicated region
      $region13: #{model_forward.1} parent=11 // pred_check
        %p141 = pneg %p58
      $region14: #{model_forward.1} parent=11 // pred_check_branch
        %143 = sbr.rel (%p141) target = $region16
      $region15: #{model_forward.1} parent=11 // pred_region
        _
      $region16: #{model_forward.1} parent=11 // pred_fallthru
        _
      // Predicated region
      $region17: #{model_forward.1} parent=11 // pred_check
        %p144 = pneg %p79
      $region18: #{model_forward.1} parent=11 // pred_check_branch
        %146 = sbr.rel (%p144) target = $region20
      $region19: #{model_forward.1} parent=11 // pred_region
        _
      $region20: #{model_forward.1} parent=11 // pred_fallthru
        _
      // Predicated region
      $region21: #{model_forward.1} parent=11 // pred_check
        %p147 = pneg %p100
      $region22: #{model_forward.1} parent=11 // pred_check_branch
        %149 = sbr.rel (%p147) target = $region24
      $region23: #{model_forward.1} parent=11 // pred_region
        _
      $region24: #{model_forward.1} parent=11 // pred_fallthru
        _
    $region12: #{model_forward.1} parent=5 // pred_fallthru
      _
    %p150 = scmp.lt.s32.totalorder %s11, 2
    // Predicated region
    $region25: #{model_forward.1} parent=5 // pred_check
      %p151 = pneg %p150
    $region26: #{model_forward.1} parent=5 // pred_check_branch
      %153 = sbr.rel (%p151) target = $region28
    $region27: #{model_forward.1} parent=5 // pred_region
      // Predicated region
      $region29: #{model_forward.1} parent=27 // pred_check
        %p154 = pneg %p31
      $region30: #{model_forward.1} parent=27 // pred_check_branch
        %156 = sbr.rel (%p154) target = $region32
      $region31: #{model_forward.1} parent=27 // pred_region
        %s157 = smul.u32 4, %s11
        %p158 = scmp.lt.s32.totalorder %s157, 7
        %s159 = scalar_select %p158, %s157, 7
        %s160 = smul.addr %s159, 3
        %s161 = smul.addr %s160, 8
        %s162 = scalar_lea.vmem %s0, %s161
        %s163 = smul.u32 4, %s11
      $region32: #{model_forward.1} parent=27 // pred_fallthru
        _
    $region28: #{model_forward.1} parent=5 // pred_fallthru
      _
    %p164 = scmp.le.s32.totalorder 1, %s11
    %p165 = scmp.lt.s32.totalorder %s11, 3
    %p166 = pnand %p164, %p165
    %p167 = pneg %p166
    // Predicated region
    $region33: #{model_forward.1} parent=5 // pred_check
      _
    $region34: #{model_forward.1} parent=5 // pred_check_branch
      %169 = sbr.rel (%p166) target = $region36
    $region35: #{model_forward.1} parent=5 // pred_region
      %s170 = ssub.s32 %s11, 1
      %s171 = smul.u32 4, %s16
      %p172 = scmp.lt.s32.totalorder %s171, 7
      %s173 = scalar_select %p172, %s171, 7
      %s174 = smul.addr %s173, 3
      %s175 = smul.addr %s174, 8
      %s176 = scalar_lea.vmem %s0, %s175
      %p177 = pneg %p37
      %p178 = pneg %p34
      %p179 = pneg %p58
      %p180 = pneg %p55
      %p181 = pneg %p79
      %p182 = pneg %p76
      %p183 = pneg %p100
      %p184 = pneg %p97
      %p185 = pneg %p126
      %p186 = pneg %p123
      %s187 = smul.u32 4, %s16
      %p188 = scmp.lt.s32.totalorder %s187, 7
      %s189 = scalar_select %p188, %s187, 7
      %s190 = smul.addr %s189, 3
      %s191 = smul.addr %s190, 8
      %s192 = scalar_lea.vmem %s4, %s191
      %s193 = smul.u32 4, %s16
      %p194 = scmp.lt.s32.totalorder %s193, 7
      %s195 = scalar_select %p194, %s193, 7
      %s196 = smul.addr %s195, 3
      %s197 = smul.addr %s196, 8
      %s198 = scalar_lea.vmem %s0, %s197
      %s199 = smul.u32 4, %s16
      %s200 = smul.u32 4, %s16
      %p201 = scmp.lt.s32.totalorder %s200, 7
      %s202 = scalar_select %p201, %s200, 7
      %s203 = smul.addr %s202, 3
      %s204 = smul.addr %s203, 8
      %s205 = scalar_lea.vmem %s4, %s204
      %s206 = smul.u32 4, %s16
      %s207 = sld [smem:[#allocation2]]
      %v208 = vld [vmem:[%s1] sm:$0xff]
      %v209 = vld [vmem:[%s1 + $0x8] sm:$0xff]
      %v210 = vld [vmem:[%s198] sm:$0xff]
      %v211 = vld [vmem:[%s198 + $0x8] sm:$0xff]
      %v212 = vld [vmem:[%s198 + $0x10] sm:$0xff]
      %v213 = vld [vmem:[%s198 + $0x18] sm:$0xff]
      %v214 = vld [vmem:[%s198 + $0x20] sm:$0xff]
      %v215 = vld [vmem:[%s198 + $0x28] sm:$0xff]
      %v216 = vld [vmem:[%s198 + $0x30] sm:$0xff]
      %v217 = vld [vmem:[%s198 + $0x38] sm:$0xff]
      %v218 = vld [vmem:[%s198 + $0x40] sm:$0xff]
      %v219 = vld [vmem:[%s198 + $0x48] sm:$0xff]
      %v220 = vld [vmem:[%s198 + $0x50] sm:$0xff]
      %v221 = vld [vmem:[%s198 + $0x58] sm:$0xff]
      %v222 = vld [vmem:[%s2] sm:$0xff]
      %v223 = vld [vmem:[%s2 + $0x8] sm:$0xff]
      %225 = vset.pattern.permute.xlu0 0
      %226 = vperm.xlu0 %225, %v222
      %v227 = vpop.permute.xlu0 %226
      %230 = vset.pattern.permute.xlu0 0
      %231 = vperm.xlu0 %230, %v223
      %v232 = vpop.permute.xlu0 %231
      %vm234 = vcmask 195584
      %v236 = vsel %vm234, %v208, 0
      %v239 = vsel %vm234, %v209, 0
      %241 = vmatpush.msra.mxu0 0.0
      %242 = vmatpush.msra.mxu0 0.0
      %243 = vmatpush.msra.mxu0 0.0
      %244 = vmatpush.msra.mxu0 0.0
      %245 = vmatpush.msra.mxu0 0.0
      %246 = vmatpush.msra.mxu0 0.0
      %247 = vmatpush.msra.mxu0 0.0
      %248 = vmatpush.msra.mxu0 0.0
      %249 = vmatpush.msra.mxu0 0.0
      %250 = vmatpush.msra.mxu0 0.0
      %251 = vmatpush.msra.mxu0 0.0
      %252 = vmatpush.msra.mxu0 0.0
      %253 = vmatpush.msra.mxu0 0.0
      %254 = vmatpush.msra.mxu0 %v212
      %255 = vmatpush.msra.mxu0 %v211
      %256 = vmatpush.msra.mxu0 %v210
      %257 = vmatmul.f32.gmra.mxu0 %v236
      %v258 = vpop.f32.mrf.mxu0
      %v259 = vadd.f32 %v227, %v258
      %260 = vmatmul.f32.gmra.mxu0 %v239
      %v261 = vpop.f32.mrf.mxu0
      %v262 = vadd.f32 %v232, %v261
      %263 = vdwg.mxu0
      %264 = vmatpush.msra.mxu0 0.0
      %265 = vmatpush.msra.mxu0 0.0
      %266 = vmatpush.msra.mxu0 0.0
      %267 = vmatpush.msra.mxu0 0.0
      %268 = vmatpush.msra.mxu0 0.0
      %269 = vmatpush.msra.mxu0 0.0
      %270 = vmatpush.msra.mxu0 0.0
      %271 = vmatpush.msra.mxu0 0.0
      %272 = vmatpush.msra.mxu0 0.0
      %273 = vmatpush.msra.mxu0 0.0
      %274 = vmatpush.msra.mxu0 0.0
      %275 = vmatpush.msra.mxu0 0.0
      %276 = vmatpush.msra.mxu0 0.0
      %277 = vmatpush.msra.mxu0 %v215
      %278 = vmatpush.msra.mxu0 %v214
      %279 = vmatpush.msra.mxu0 %v213
      %280 = vmatmul.f32.gmra.mxu0 %v236
      %v281 = vpop.f32.mrf.mxu0
      %v282 = vadd.f32 %v227, %v281
      %283 = vmatmul.f32.gmra.mxu0 %v239
      %v284 = vpop.f32.mrf.mxu0
      %v285 = vadd.f32 %v232, %v284
      %286 = vdwg.mxu0
      %287 = vmatpush.msra.mxu0 0.0
      %288 = vmatpush.msra.mxu0 0.0
      %289 = vmatpush.msra.mxu0 0.0
      %290 = vmatpush.msra.mxu0 0.0
      %291 = vmatpush.msra.mxu0 0.0
      %292 = vmatpush.msra.mxu0 0.0
      %293 = vmatpush.msra.mxu0 0.0
      %294 = vmatpush.msra.mxu0 0.0
      %295 = vmatpush.msra.mxu0 0.0
      %296 = vmatpush.msra.mxu0 0.0
      %297 = vmatpush.msra.mxu0 0.0
      %298 = vmatpush.msra.mxu0 0.0
      %299 = vmatpush.msra.mxu0 0.0
      %300 = vmatpush.msra.mxu0 %v218
      %301 = vmatpush.msra.mxu0 %v217
      %302 = vmatpush.msra.mxu0 %v216
      %303 = vmatmul.f32.gmra.mxu0 %v236
      %v304 = vpop.f32.mrf.mxu0
      %v305 = vadd.f32 %v227, %v304
      %306 = vmatmul.f32.gmra.mxu0 %v239
      %v307 = vpop.f32.mrf.mxu0
      %v308 = vadd.f32 %v232, %v307
      %309 = vdwg.mxu0
      %310 = vmatpush.msra.mxu0 0.0
      %311 = vmatpush.msra.mxu0 0.0
      %312 = vmatpush.msra.mxu0 0.0
      %313 = vmatpush.msra.mxu0 0.0
      %314 = vmatpush.msra.mxu0 0.0
      %315 = vmatpush.msra.mxu0 0.0
      %316 = vmatpush.msra.mxu0 0.0
      %317 = vmatpush.msra.mxu0 0.0
      %318 = vmatpush.msra.mxu0 0.0
      %319 = vmatpush.msra.mxu0 0.0
      %320 = vmatpush.msra.mxu0 0.0
      %321 = vmatpush.msra.mxu0 0.0
      %322 = vmatpush.msra.mxu0 0.0
      %323 = vmatpush.msra.mxu0 %v221
      %324 = vmatpush.msra.mxu0 %v220
      %325 = vmatpush.msra.mxu0 %v219
      %326 = vmatmul.f32.gmra.mxu0 %v236
      %v327 = vpop.f32.mrf.mxu0
      %v328 = vadd.f32 %v227, %v327
      %329 = vmatmul.f32.gmra.mxu0 %v239
      %v330 = vpop.f32.mrf.mxu0
      %v331 = vadd.f32 %v232, %v330
      %332 = vdwg.mxu0
      %v333 = vstv %s207
      %v334 = vadd.f32 %v333, 0.0
      %vm335 = vcmask 146432
      %336 = vst.msk [vmem:[%s205] sm:$0xff] %vm335, %v334
      %337 = vst.msk [vmem:[%s205 + $0x8] sm:$0xff] %vm335, %v334
      %vm338 = vcmask 140288
      %339 = vst.msk [vmem:[%s205 + $0x10] sm:$0x3] %vm338, %v334
      %340 = vst.msk [vmem:[%s205 + $0x18] sm:$0xff] %vm335, %v334
      %341 = vst.msk [vmem:[%s205 + $0x20] sm:$0xff] %vm335, %v334
      %342 = vst.msk [vmem:[%s205 + $0x28] sm:$0x3] %vm338, %v334
      %343 = vst.msk [vmem:[%s205 + $0x30] sm:$0xff] %vm335, %v334
      %344 = vst.msk [vmem:[%s205 + $0x38] sm:$0xff] %vm335, %v334
      %345 = vst.msk [vmem:[%s205 + $0x40] sm:$0x3] %vm338, %v334
      %346 = vst.msk [vmem:[%s205 + $0x48] sm:$0xff] %vm335, %v334
      %347 = vst.msk [vmem:[%s205 + $0x50] sm:$0xff] %vm335, %v334
      %348 = vst.msk [vmem:[%s205 + $0x58] sm:$0x3] %vm338, %v334
      %357 = vrot.lane.b32.xlu0 %v259, 1
      %v358 = vpop.permute.xlu0 %357
      %359 = vrot.lane.b32.xlu0 %v262, 1
      %v360 = vpop.permute.xlu0 %359
      %361 = vrot.lane.b32.xlu0 %v282, 1
      %v362 = vpop.permute.xlu0 %361
      %363 = vrot.lane.b32.xlu0 %v285, 1
      %v364 = vpop.permute.xlu0 %363
      %365 = vrot.lane.b32.xlu0 %v305, 1
      %v366 = vpop.permute.xlu0 %365
      %367 = vrot.lane.b32.xlu0 %v308, 1
      %v368 = vpop.permute.xlu0 %367
      %369 = vrot.lane.b32.xlu0 %v328, 1
      %v370 = vpop.permute.xlu0 %369
      %371 = vrot.lane.b32.xlu0 %v331, 1
      %v372 = vpop.permute.xlu0 %371
      %vm381 = vcmask 138248
      %382 = vst.msk [vmem:[%s205 + $0x1] sm:$0xff] %vm381, %v358
      %383 = vst.msk [vmem:[%s205 + $0x9] sm:$0xff] %vm381, %v360
      %384 = vst.msk [vmem:[%s205 + $0x19] sm:$0xff] %vm381, %v362
      %385 = vst.msk [vmem:[%s205 + $0x21] sm:$0xff] %vm381, %v364
      %386 = vst.msk [vmem:[%s205 + $0x31] sm:$0xff] %vm381, %v366
      %387 = vst.msk [vmem:[%s205 + $0x39] sm:$0xff] %vm381, %v368
      %388 = vst.msk [vmem:[%s205 + $0x49] sm:$0xff] %vm381, %v370
      %389 = vst.msk [vmem:[%s205 + $0x51] sm:$0xff] %vm381, %v372
      %s390 = smul.u32 4, %s16
      %p391 = scmp.lt.s32.totalorder %s390, 7
      %s392 = scalar_select %p391, %s390, 7
      %s393 = smul.addr %s392, 3
      %s394 = smul.addr %s393, 8
      %s395 = scalar_lea.vmem %s4, %s394
      // Predicated region
      $region37: #{model_forward.1} parent=35 // pred_check
        %p396 = pneg %p123
      $region38: #{model_forward.1} parent=35 // pred_check_branch
        %398 = sbr.rel (%p396) target = $region40
      $region39: #{model_forward.1} parent=35 // pred_region
        %s399 = smul.u32 4, %s16
      $region40: #{model_forward.1} parent=35 // pred_fallthru
        _
    $region36: #{model_forward.1} parent=5 // pred_fallthru
      _
    %p400 = scmp.le.s32.totalorder 2, %s11
    // Predicated region
    $region41: #{model_forward.1} parent=5 // pred_check
      %p401 = pneg %p400
    $region42: #{model_forward.1} parent=5 // pred_check_branch
      %403 = sbr.rel (%p401) target = $region44
    $region43: #{model_forward.1} parent=5 // pred_region
      %s404 = ssub.s32 %s11, 2
      // Predicated region
      $region45: #{model_forward.1} parent=43 // pred_check
        %p405 = pneg %p129
      $region46: #{model_forward.1} parent=43 // pred_check_branch
        %407 = sbr.rel (%p405) target = $region48
      $region47: #{model_forward.1} parent=43 // pred_region
        %s408 = smul.u32 4, %s17
        %p409 = scmp.lt.s32.totalorder %s408, 7
        %s410 = scalar_select %p409, %s408, 7
        %s411 = smul.addr %s410, 3
        %s412 = smul.addr %s411, 8
        %s413 = scalar_lea.vmem %s4, %s412
      $region48: #{model_forward.1} parent=43 // pred_fallthru
        _
    $region44: #{model_forward.1} parent=5 // pred_fallthru
      _
  $region6: #{model_forward.1} parent=0 // loop_footer
    %s15 = sadd.s32 1, %s11
  $region7: #{model_forward.1} parent=0 // loop_footer_branch
    %10 = sbr.rel target = $region3
  $region8: #{model_forward.1} parent=0 // loop_exit
    _

</llo_original>
